<compile_context>
chip_gen: v7x
topology: tpu7x:2x2x1
jax: 0.10.0
libtpu: 0.0.40
codegen_flags: <defaults>
</compile_context>

<pallas_src>
import functools

import jax
import jax.numpy as jnp
from jax.experimental import pallas as pl
from jax.experimental.pallas import tpu as pltpu


_TARGET_TILE_BYTES = 4 * 1024 * 1024      # ~4 MiB input tile per grid step
_VMEM_LIMIT_BYTES = 40 * 1024 * 1024      # explicit: > v5e 16 MiB default, < v7x 64 MiB


def _round_up(v, m):
    return (v + m - 1) // m * m


def _aqprofit_kernel(params_ref, x_ref, o_ref, *, scale):
    # params: [inv_a, inv_scale, c] in SMEM (computed once in the wrapper).
    inv_a = params_ref[0]
    inv_scale = params_ref[1]
    c = params_ref[2]
    x = x_ref[...].astype(jnp.float32)
    xc = jnp.clip(x * inv_a, 0.0, 1.0)           # hardtanh(input / a, 0, 1)
    xq = jnp.round(xc * scale) * inv_scale       # RoundQuant forward
    o_ref[...] = (xq * c).astype(o_ref.dtype)


def aqprofit_forward(x, a_param, c_param, abit):
    """Pallas implementation of AQPROFIT.forward.

    x:        NCHW array [B, C, H, W]
    a_param:  scalar (pre-softplus), corresponds to nn.Parameter self.a
    c_param:  scalar (pre-softplus), corresponds to nn.Parameter self.c
    abit:     activation bit-width (32 => identity)
    """
    if abit == 32 or x.shape[1] <= 3:
        return x

    scale = float(2 ** abit - 1)
    orig_shape = x.shape
    total = int(x.size)
    itemsize = jnp.dtype(x.dtype).itemsize

    # ---- lane-dense 2-D view (n_rows, tn); pad only if 128 doesn't divide ----
    tn = None
    for cand in (1024, 512, 256, 128):
        if total % cand == 0:
            tn = cand
            break
    x_flat = x.reshape(-1)
    if tn is None:                              # rare ragged tail: total % 128 != 0
        tn = 128
        padded_total = _round_up(total, tn)
        x_flat = jnp.pad(x_flat, (0, padded_total - total))
    else:
        padded_total = total
    n_rows = padded_total // tn
    x2d = x_flat.reshape(n_rows, tn)

    # ---- tile-height selection (dtype-scaled, keep >=2 grid steps) ----
    tm_target = max(8, _round_up(_TARGET_TILE_BYTES // (tn * itemsize), 8))
    if n_rows <= 8:
        tm = n_rows                             # single block == full rows dim (legal)
    else:
        tm = min(tm_target, _round_up(pl.cdiv(n_rows, 2), 8))
    grid = (pl.cdiv(n_rows, tm),)               # partial edge block is masked by Pallas

    # ---- hoist scalar math out of the kernel (computed once in XLA) ----
    a = jax.nn.softplus(jnp.asarray(a_param, dtype=jnp.float32))
    c = jax.nn.softplus(jnp.asarray(c_param, dtype=jnp.float32))
    inv_a = jnp.float32(1.0) / a
    inv_scale = jnp.float32(1.0) / jnp.float32(scale)
    params = jnp.stack([inv_a, inv_scale, c]).astype(jnp.float32)   # (3,) -> SMEM

    out2d = pl.pallas_call(
        functools.partial(_aqprofit_kernel, scale=scale),
        out_shape=jax.ShapeDtypeStruct((n_rows, tn), x.dtype),
        grid=grid,
        in_specs=[
            pl.BlockSpec(memory_space=pltpu.MemorySpace.SMEM),   # [inv_a, inv_scale, c]
            pl.BlockSpec((tm, tn), lambda i: (i, 0)),            # x row-tile
        ],
        out_specs=pl.BlockSpec((tm, tn), lambda i: (i, 0)),
        compiler_params=pltpu.CompilerParams(
            dimension_semantics=("parallel",),                   # megacore on v7x
            vmem_limit_bytes=_VMEM_LIMIT_BYTES,
        ),
        cost_estimate=pl.CostEstimate(
            flops=6 * padded_total,
            transcendentals=0,
            bytes_accessed=2 * padded_total * itemsize,
        ),
    )(params, x2d)

    out_flat = out2d.reshape(-1)
    if padded_total != total:
        out_flat = out_flat[:total]
    return out_flat.reshape(orig_shape)


def _reference_forward(x, a_param, c_param, abit):
    """Pure-JAX reference mirroring the PyTorch module (same op sequence as kernel)."""
    if abit == 32 or x.shape[1] <= 3:
        return x
    scale = float(2 ** abit - 1)
    a = jax.nn.softplus(jnp.asarray(a_param, dtype=jnp.float32))
    c = jax.nn.softplus(jnp.asarray(c_param, dtype=jnp.float32))
    inv_a = jnp.float32(1.0) / a
    inv_scale = jnp.float32(1.0) / jnp.float32(scale)
    xf = x.astype(jnp.float32)
    xc = jnp.clip(xf * inv_a, 0.0, 1.0)
    xq = jnp.round(xc * scale) * inv_scale
    return (xq * c).astype(x.dtype)


def _check(x, a_param, c_param, abit):
    out = jax.block_until_ready(aqprofit_forward(x, a_param, c_param, abit))
    ref = _reference_forward(x, a_param, c_param, abit)
    assert out.shape == x.shape and out.dtype == x.dtype
    assert jnp.allclose(out, ref, atol=1e-6, rtol=1e-6)
    return out


if __name__ == "__main__":
    key = jax.random.PRNGKey(0)

    # Module __init__: a = 1.0, c = 1.0 (deterministic), pbit = 8 (unused in fwd)
    a_param = 1.0
    c_param = 1.0
    abit = 4  # quantization path exercised (abit != 32, C > 3)

    # --- small primary test (single grid step, tn=1024) ---
    x = jax.random.normal(key, (2, 4, 16, 16), dtype=jnp.float32)
    _check(x, a_param, c_param, abit)

    # --- larger test: multi-step grid, no padding, even split for 2 TCs ---
    x_big = jax.random.normal(jax.random.PRNGKey(1), (8, 64, 40, 40), dtype=jnp.float32)
    _check(x_big, a_param, c_param, abit)

    # --- masked partial edge block (n_rows=10, tm=8, grid=2) ---
    x_edge = jax.random.normal(jax.random.PRNGKey(2), (2, 10, 16, 32), dtype=jnp.float32)
    _check(x_edge, a_param, c_param, abit)

    # --- non-1024-divisible element count (falls back to tn=512) ---
    x_512 = jax.random.normal(jax.random.PRNGKey(3), (2, 5, 16, 16), dtype=jnp.float32)
    _check(x_512, a_param, c_param, abit)

    # --- ragged total (not a multiple of 128): rare pad path ---
    x_rag = jax.random.normal(jax.random.PRNGKey(4), (2, 5, 7, 9), dtype=jnp.float32)
    _check(x_rag, a_param, c_param, abit)

    # --- identity paths ---
    out_id = aqprofit_forward(x, a_param, c_param, 32)               # abit == 32
    assert jnp.array_equal(out_id, x)
    x_small_c = jax.random.normal(key, (2, 3, 16, 16), dtype=jnp.float32)
    out_small = aqprofit_forward(x_small_c, a_param, c_param, abit)  # C <= 3
    assert jnp.array_equal(out_small, x_small_c)

    print("KERNEL_OK")
</pallas_src>

<mosaic_0001>
module attributes {stable_mosaic.version = 11 : i64} {
  func.func @_aqprofit_kernel(%arg0: i32, %arg1: memref<3xf32, #tpu.memory_space<smem>>, %arg2: memref<2x1024xf32, #tpu.memory_space<vmem>>, %arg3: memref<2x1024xf32, #tpu.memory_space<vmem>>) attributes {dimension_semantics = [#tpu.dimension_semantics<parallel>], iteration_bounds = array<i64: 1>, scalar_prefetch = 0 : i64, scratch_operands = 0 : i64, tpu.core_type = #tpu.core_type<tc>, window_params = [{transform_indices = @transform_0, window_bounds = array<i64: 3>}, {transform_indices = @transform_1, window_bounds = array<i64: 2, 1024>}, {transform_indices = @transform_2, window_bounds = array<i64: 2, 1024>}]} {
    %c0 = arith.constant 0 : index
    %0 = memref.load %arg1[%c0] : memref<3xf32, #tpu.memory_space<smem>>
    %c1 = arith.constant 1 : index
    %1 = memref.load %arg1[%c1] : memref<3xf32, #tpu.memory_space<smem>>
    %c2 = arith.constant 2 : index
    %2 = memref.load %arg1[%c2] : memref<3xf32, #tpu.memory_space<smem>>
    %c0_0 = arith.constant 0 : index
    %c0_1 = arith.constant 0 : index
    %3 = vector.load %arg2[%c0_0, %c0_1] : memref<2x1024xf32, #tpu.memory_space<vmem>>, vector<2x1024xf32>
    %4 = vector.broadcast %0 : f32 to vector<2x1024xf32>
    %5 = arith.mulf %3, %4 : vector<2x1024xf32>
    %cst = arith.constant 0.000000e+00 : f32
    %cst_2 = arith.constant 1.000000e+00 : f32
    %6 = vector.broadcast %cst : f32 to vector<2x1024xf32>
    %7 = arith.maximumf %6, %5 : vector<2x1024xf32>
    %8 = vector.broadcast %cst_2 : f32 to vector<2x1024xf32>
    %9 = arith.minimumf %8, %7 : vector<2x1024xf32>
    %cst_3 = arith.constant 1.500000e+01 : f32
    %10 = vector.broadcast %cst_3 : f32 to vector<2x1024xf32>
    %11 = arith.mulf %9, %10 : vector<2x1024xf32>
    %12 = math.roundeven %11 : vector<2x1024xf32>
    %13 = vector.broadcast %1 : f32 to vector<2x1024xf32>
    %14 = arith.mulf %12, %13 : vector<2x1024xf32>
    %15 = vector.broadcast %2 : f32 to vector<2x1024xf32>
    %16 = arith.mulf %14, %15 : vector<2x1024xf32>
    %c0_4 = arith.constant 0 : index
    %c0_5 = arith.constant 0 : index
    %17 = vector.load %arg3[%c0_4, %c0_5] : memref<2x1024xf32, #tpu.memory_space<vmem>>, vector<2x1024xf32>
    tpu.vector_store %arg3[%c0_4, %c0_5], %16 {strides = array<i32>} : memref<2x1024xf32, #tpu.memory_space<vmem>>, vector<2x1024xf32>,
    return
  }
  func.func @transform_0(%arg0: i32) -> i32 {
    %c0_i32 = arith.constant 0 : i32
    %c0_i32_0 = arith.constant 0 : i32
    return %c0_i32 : i32
  }
  func.func @transform_1(%arg0: i32) -> (i32, i32) {
    %c0_i32 = arith.constant 0 : i32
    %c0_i32_0 = arith.constant 0 : i32
    return %arg0, %c0_i32 : i32, i32
  }
  func.func @transform_2(%arg0: i32) -> (i32, i32) {
    %c0_i32 = arith.constant 0 : i32
    %c0_i32_0 = arith.constant 0 : i32
    return %arg0, %c0_i32 : i32, i32
  }
}

</mosaic_0001>

<llo_original>
// kernel: tpu_custom_call.1
$region0: #{tpu_custom_call.1}
  #allocation0 [shape = 'u32[]', space=smem, size = 0x4, offset = 0x4, fixed_abs, tag = 'smem constant byte address 0x4 - core index']
  #allocation1 [shape = 'u32[144,128]{1,0:T(1,128)}', space=vmem, size = 0x12000, scoped, tag = 'internal scratch']
  %s0 = inlined_call_operand.hbm [shape: f32[3], index: 0, kind: input, shape index: {}]
  %s1 = inlined_call_operand.hbm [shape: f32[2,1024], index: 1, kind: input, shape index: {}]
  %s2 = inlined_call_operand.hbm [shape: f32[2,1024], index: 2, kind: output, shape index: {}]
  %s3 = sld [smem:[#allocation0]]
  $region26: #{tpu_custom_call.1} parent=0
    _
  %s5 = ssub.s32 1, %s3
  %s6 = scalar_select 0, %s5, %s3
  $region1: #{tpu_custom_call.1} parent=0
    #allocation2 [shape = 'u8[512]{0}', space=smem, size = 0x200, scoped, tag = 'input window, operand 0, single buffered']
    #allocation3 [shape = 's32[1]{0}', space=sflag, size = 0x4, scoped, tag = 'scoped memory for tpu_custom_call.1']
    #allocation4 [shape = 's32[1]{0}', space=sflag, size = 0x4, scoped, tag = 'scoped memory for tpu_custom_call.1']
    #allocation5 [shape = 's32[1]{0}', space=sflag, size = 0x4, scoped, tag = 'scoped memory for tpu_custom_call.1']
    #allocation6 [shape = 'u8[8192]{0}', space=vmem, size = 0x2000, scoped, tag = 'input window, operand 1, single buffered']
    #allocation7 [shape = 'u8[8192]{0}', space=vmem, size = 0x2000, scoped, tag = 'output window, operand 0, single buffered']
    %7 = vsyncpa [#allocation5], 0
    %8 = vsyncpa [#allocation3], 0
    %9 = vsyncpa [#allocation4], 0
    // Predicated region
    $region2: #{tpu_custom_call.1} parent=1 // pred_check
      _
    $region3: #{tpu_custom_call.1} parent=1 // pred_check_branch
      %11 = sbr.rel (0) target = $region5
    $region4: #{tpu_custom_call.1} parent=1 // pred_region
      %s13 = ssub.s32 16, 16
      %14 = vsyncadd [#allocation5], %s13
      %17 = dma.hbm_to_smem %s0, 16, [#allocation2], [#allocation5]
    $region5: #{tpu_custom_call.1} parent=1 // pred_fallthru
      _
    // Predicated region
    $region6: #{tpu_custom_call.1} parent=1 // pred_check
      _
    $region7: #{tpu_custom_call.1} parent=1 // pred_check_branch
      %19 = sbr.rel (0) target = $region9
    $region8: #{tpu_custom_call.1} parent=1 // pred_region
      %s21 = ssub.s32 256, 256
      %22 = vsyncadd [#allocation3], %s21
      %s24 = sshll.u32 [#allocation6], 4
      %s25 = int_to_ptr.vmem [resolvable:$true] %s24
      %27 = dma.hbm_to_vmem [thread:$0]  %s1, 256, %s25, [#allocation3]
    $region9: #{tpu_custom_call.1} parent=1 // pred_fallthru
      _
    // Predicated region
    $region10: #{tpu_custom_call.1} parent=1 // pred_check
      _
    $region11: #{tpu_custom_call.1} parent=1 // pred_check_branch
      %29 = sbr.rel (0) target = $region13
    $region12: #{tpu_custom_call.1} parent=1 // pred_region
      %30 = dma.done [#allocation5], 16
    $region13: #{tpu_custom_call.1} parent=1 // pred_fallthru
      _
    // Predicated region
    $region14: #{tpu_custom_call.1} parent=1 // pred_check
      _
    $region15: #{tpu_custom_call.1} parent=1 // pred_check_branch
      %32 = sbr.rel (0) target = $region17
    $region16: #{tpu_custom_call.1} parent=1 // pred_region
      %33 = dma.done [#allocation3], 256
    $region17: #{tpu_custom_call.1} parent=1 // pred_fallthru
      _
    %34 = sfence
    %s35 = sld [smem:[#allocation2]]
    %s36 = sld [smem:[#allocation2 + $0x1]]
    %s37 = sld [smem:[#allocation2 + $0x2]]
    %v38 = vld [vmem:[#allocation6] sm:$0xff]
    %v39 = vld [vmem:[#allocation6 + $0x8] sm:$0xff]
    %v40 = vstv %s35
    %v41 = vmul.f32 %v38, %v40
    %v42 = vmul.f32 %v39, %v40
    %v43 = vmax.f32 %v41, 0.0
    %v44 = vmax.f32 %v42, 0.0
    %v45 = vmin.f32 %v43, 1.0
    %v46 = vmin.f32 %v44, 1.0
    %v47 = vmul.f32 %v45, 15.0
    %v48 = vmul.f32 %v46, 15.0
    %v49 = vround.ne.pseudo %v47
    %v50 = vround.ne.pseudo %v48
    %v51 = vstv %s36
    %v52 = vmul.f32 %v49, %v51
    %v53 = vmul.f32 %v50, %v51
    %v54 = vstv %s37
    %v55 = vmul.f32 %v52, %v54
    %v56 = vmul.f32 %v53, %v54
    %57 = vst [vmem:[#allocation7] sm:$0xff] %v55
    %58 = vst [vmem:[#allocation7 + $0x8] sm:$0xff] %v56
    // Predicated region
    $region18: #{tpu_custom_call.1} parent=1 // pred_check
      _
    $region19: #{tpu_custom_call.1} parent=1 // pred_check_branch
      %60 = sbr.rel (0) target = $region21
    $region20: #{tpu_custom_call.1} parent=1 // pred_region
      %s62 = ssub.s32 256, 256
      %63 = vsyncadd [#allocation4], %s62
      %s65 = sshll.u32 [#allocation7], 4
      %s66 = int_to_ptr.vmem [resolvable:$true] %s65
      %68 = dma.vmem_to_hbm [thread:$0]  %s66, 256, %s2, [#allocation4]
    $region21: #{tpu_custom_call.1} parent=1 // pred_fallthru
      _
    // Predicated region
    $region22: #{tpu_custom_call.1} parent=1 // pred_check
      _
    $region23: #{tpu_custom_call.1} parent=1 // pred_check_branch
      %70 = sbr.rel (0) target = $region25
    $region24: #{tpu_custom_call.1} parent=1 // pred_region
      %71 = dma.done [#allocation4], 256
    $region25: #{tpu_custom_call.1} parent=1 // pred_fallthru
      _
    %72 = vsyncpa [#allocation3], 1
    %73 = vsyncpa [#allocation4], 1
    %74 = vsyncpa [#allocation5], 1

</llo_original>
